<compile_context>
chip_gen: v6e
topology: v6e:2x2x1
jax: 0.10.0
libtpu: 0.0.40
codegen_flags: <defaults>
</compile_context>

<pallas_src>
import jax
import jax.numpy as jnp
from jax.experimental import pallas as pl
from jax.experimental.pallas import tpu as pltpu

_LANE = 128   # vreg lane width
_NSUMS = 7    # number of global sums accumulated


def _round_up(a, b):
    return (a + b - 1) // b * b


def _make_sums_kernel(rows, tr, chunk, inner, tail):
    """Build the streaming partial-sum kernel.

    o_ref layout (VMEM accumulator, f32[7, 8, 128]):
      0: sum(x)        1: sum(x^2)
      2: sum(y)        3: sum(y^2)
      4: sum((x-y)^2)  5: sum(|x-y|)
      6: sum((x^3-y^3)^2)
    """
    nchunks = tr // chunk
    r8 = chunk // 8

    def _accum(o_ref, x, y):
        d = x - y
        xx = x * x
        yy = y * y
        d3 = xx * x - yy * y  # x^3 - y^3
        terms = (x, xx, y, yy, d * d, jnp.abs(d), d3 * d3)
        for k, t in enumerate(terms):
            # (chunk, 128) -> (chunk//8, 8, 128) is vreg-aligned (free); the
            # axis-0 sum is pure VPU vreg adds, no cross-lane XLU work.
            o_ref[k] += jnp.sum(t.reshape(r8, 8, _LANE), axis=0)

    def kernel(x_ref, y_ref, o_ref):
        c = pl.program_id(0)   # slab / TensorCore split ("parallel")
        i = pl.program_id(1)   # streaming reduction axis ("arbitrary")

        @pl.when(i == 0)
        def _init():
            o_ref[...] = jnp.zeros_like(o_ref)

        blk = c * inner + i    # logical block index over the row dimension
        row0 = blk * tr        # logical first row of this block

        def run(masked):
            def body_at(off):
                x = x_ref[pl.ds(off, chunk), :].astype(jnp.float32)
                y = y_ref[pl.ds(off, chunk), :].astype(jnp.float32)
                if masked:
                    # Zero is neutral for every accumulated sum.
                    rid = jax.lax.broadcasted_iota(
                        jnp.int32, (chunk, _LANE), 0)
                    keep = (rid + (row0 + off)) < rows
                    x = jnp.where(keep, x, 0.0)
                    y = jnp.where(keep, y, 0.0)
                _accum(o_ref, x, y)

            if nchunks == 1:
                body_at(0)
            else:
                @pl.loop(0, nchunks)
                def _(s):
                    body_at(pl.multiple_of(s * chunk, chunk))

        if not tail:
            # rows divides exactly into the logical blocks: never mask.
            run(masked=False)
        else:
            needs_mask = (blk + 1) * tr > rows   # ragged / duplicated block

            @pl.when(jnp.logical_not(needs_mask))
            def _fast():
                run(masked=False)

            @pl.when(needs_mask)
            def _masked():
                run(masked=True)

    return kernel


def l3_mstd_mse(x, y, *, tile_rows=8192, max_slabs=2):
    """loss = mse(x^3, y^3)**0.25 * (mse + mae) + (std(x)-std(y))^2 + (mean(x)-mean(y))^2."""
    assert x.shape == y.shape
    n = x.size

    xf = x.reshape(-1)
    yf = y.reshape(-1)

    rows = -(-n // _LANE)
    pad = rows * _LANE - n
    if pad:
        # Rare (numel % 128 != 0).  Zero padding is neutral for every sum.
        xf = jnp.pad(xf, (0, pad))
        yf = jnp.pad(yf, (0, pad))
    xf = xf.reshape(rows, _LANE)   # free reshape: native dtype, no copy
    yf = yf.reshape(rows, _LANE)

    # Row tile (tr) and in-kernel accumulation chunk.  tr is always a multiple
    # of chunk; both are multiples of 16 (satisfies (8,128) f32 / (16,128)
    # bf16 tiling and the (chunk//8, 8, 128) reshape).
    if rows >= 512:
        chunk = 512
        tr = min(_round_up(int(tile_rows), 512), _round_up(rows, 512))
    else:
        tr = _round_up(rows, 16)
        chunk = tr

    blocks_total = -(-rows // tr)
    num_slabs = min(int(max_slabs), blocks_total)   # 2-way TC split on v7x
    inner = -(-blocks_total // num_slabs)
    # True iff some logical block extends past `rows` (partial last block or a
    # duplicated block when blocks_total is odd) -> masking path is emitted.
    tail = (num_slabs * inner * tr) != rows

    kernel = _make_sums_kernel(rows, tr, chunk, inner, tail)

    # Clamp the block index so duplicated trailing steps (odd blocks_total)
    # re-read the last valid block instead of going out of bounds; their
    # contribution is masked to zero in-kernel.
    in_spec = pl.BlockSpec(
        (tr, _LANE),
        lambda c, i: (jnp.minimum(c * inner + i, blocks_total - 1), 0),
    )
    # One resident accumulator slab per slab index c; it stays in VMEM across
    # the whole inner ("arbitrary") axis.
    out_spec = pl.BlockSpec(
        (None, _NSUMS, 8, _LANE), lambda c, i: (c, 0, 0, 0)
    )

    partials = pl.pallas_call(
        kernel,
        out_shape=jax.ShapeDtypeStruct(
            (num_slabs, _NSUMS, 8, _LANE), jnp.float32),
        grid_spec=pltpu.PrefetchScalarGridSpec(
            num_scalar_prefetch=0,
            grid=(num_slabs, inner),
            in_specs=[in_spec, in_spec],
            out_specs=out_spec,
        ),
        compiler_params=pltpu.CompilerParams(
            dimension_semantics=("parallel", "arbitrary"),
            vmem_limit_bytes=32 * 1024 * 1024,
        ),
    )(xf, yf)

    # Single cross-lane reduction of the tiny (num_slabs, 7, 8, 128) slab.
    s = jnp.sum(partials, axis=(0, 2, 3))
    sx, sxx, sy, syy, sdd, sad, sd6 = (s[k] for k in range(_NSUMS))
    nf = jnp.float32(n)

    mean_x = sx / nf
    mean_y = sy / nf
    # torch.std is the unbiased estimator (ddof=1).  One-pass formula; the
    # max(., 0) guards sqrt against tiny negatives from f32 cancellation.
    var_x = jnp.maximum(sxx - sx * sx / nf, 0.0) / (nf - 1.0)
    var_y = jnp.maximum(syy - sy * sy / nf, 0.0) / (nf - 1.0)
    std_term = (jnp.sqrt(var_x) - jnp.sqrt(var_y)) ** 2
    mean_term = (mean_x - mean_y) ** 2
    mstd = std_term + mean_term

    mse = sdd / nf
    mae = sad / nf
    msea = mse + mae
    l3 = (sd6 / nf) ** 0.25          # mse_loss(x^3, y^3) ** 0.25

    return l3 * msea + mstd


def _reference(x, y):
    std = (jnp.std(x, ddof=1) - jnp.std(y, ddof=1)) ** 2
    mean = (jnp.mean(x) - jnp.mean(y)) ** 2
    mstd = std + mean
    mse = jnp.mean((x - y) ** 2)
    mae = jnp.mean(jnp.abs(x - y))
    msea = mse + mae
    l3 = jnp.mean((x ** 3 - y ** 3) ** 2) ** 0.25
    return l3 * msea + mstd


if __name__ == "__main__":
    key = jax.random.PRNGKey(0)
    kx, ky = jax.random.split(key)
    x = jax.random.normal(kx, (2, 4, 16, 16), dtype=jnp.float32)
    y = jax.random.normal(ky, (2, 4, 16, 16), dtype=jnp.float32)

    out = l3_mstd_mse(x, y)
    jax.block_until_ready(out)

    ref = _reference(x, y)
    assert jnp.allclose(out, ref, rtol=2e-4, atol=1e-5), (out, ref)
    print("KERNEL_OK")
</pallas_src>

<mosaic_0001>
module attributes {stable_mosaic.version = 11 : i64} {
  func.func @kernel(%arg0: i32, %arg1: i32, %arg2: memref<16x128xf32, #tpu.memory_space<vmem>>, %arg3: memref<16x128xf32, #tpu.memory_space<vmem>>, %arg4: memref<1x7x8x128xf32, #tpu.memory_space<vmem>>) attributes {dimension_semantics = [#tpu.dimension_semantics<parallel>, #tpu.dimension_semantics<arbitrary>], iteration_bounds = array<i64: 1, 1>, scalar_prefetch = 0 : i64, scratch_operands = 0 : i64, tpu.core_type = #tpu.core_type<tc>, window_params = [{transform_indices = @transform_0, window_bounds = array<i64: 16, 128>}, {transform_indices = @transform_1, window_bounds = array<i64: 16, 128>}, {transform_indices = @transform_2, window_bounds = array<i64: 1, 7, 8, 128>}]} {
    %c0_i32 = arith.constant 0 : i32
    %0 = arith.cmpi eq, %arg1, %c0_i32 : i32
    %1 = arith.extui %0 : i1 to i32
    %c0_i32_0 = arith.constant 0 : i32
    %2 = arith.cmpi ne, %1, %c0_i32_0 : i32
    scf.if %2 {
      %cst_60 = arith.constant 0.000000e+00 : f32
      %70 = vector.broadcast %cst_60 : f32 to vector<7x8x128xf32>
      %c0_61 = arith.constant 0 : index
      %c0_62 = arith.constant 0 : index
      %c0_63 = arith.constant 0 : index
      %c0_64 = arith.constant 0 : index
      %71 = vector.load %arg4[%c0_61, %c0_62, %c0_63, %c0_64] : memref<1x7x8x128xf32, #tpu.memory_space<vmem>>, vector<1x7x8x128xf32>
      %72 = vector.shape_cast %71 : vector<1x7x8x128xf32> to vector<7x8x128xf32>
      %73 = vector.shape_cast %70 : vector<7x8x128xf32> to vector<1x7x8x128xf32>
      tpu.vector_store %arg4[%c0_61, %c0_62, %c0_63, %c0_64], %73 {strides = array<i32>} : memref<1x7x8x128xf32, #tpu.memory_space<vmem>>, vector<1x7x8x128xf32>,
    } else {
    }
    %c0 = arith.constant 0 : index
    %c0_1 = arith.constant 0 : index
    %3 = vector.load %arg2[%c0, %c0_1] : memref<16x128xf32, #tpu.memory_space<vmem>>, vector<16x128xf32>
    %c0_2 = arith.constant 0 : index
    %c0_3 = arith.constant 0 : index
    %4 = vector.load %arg3[%c0_2, %c0_3] : memref<16x128xf32, #tpu.memory_space<vmem>>, vector<16x128xf32>
    %5 = arith.subf %3, %4 : vector<16x128xf32>
    %6 = arith.mulf %3, %3 : vector<16x128xf32>
    %7 = arith.mulf %4, %4 : vector<16x128xf32>
    %8 = arith.mulf %6, %3 : vector<16x128xf32>
    %9 = arith.mulf %7, %4 : vector<16x128xf32>
    %10 = arith.subf %8, %9 : vector<16x128xf32>
    %11 = arith.mulf %5, %5 : vector<16x128xf32>
    %12 = math.absf %5 : vector<16x128xf32>
    %13 = arith.mulf %10, %10 : vector<16x128xf32>
    %c0_4 = arith.constant 0 : index
    %c0_5 = arith.constant 0 : index
    %c0_6 = arith.constant 0 : index
    %c0_7 = arith.constant 0 : index
    %14 = vector.load %arg4[%c0_4, %c0_5, %c0_6, %c0_7] : memref<1x7x8x128xf32, #tpu.memory_space<vmem>>, vector<1x1x8x128xf32>
    %15 = vector.shape_cast %14 : vector<1x1x8x128xf32> to vector<8x128xf32>
    %16 = vector.shape_cast %3 : vector<16x128xf32> to vector<2x8x128xf32>
    %cst = arith.constant dense<0.000000e+00> : vector<8x128xf32>
    %17 = vector.multi_reduction <add>, %16, %cst [0] : vector<2x8x128xf32> to vector<8x128xf32>
    %18 = arith.addf %15, %17 : vector<8x128xf32>
    %c0_8 = arith.constant 0 : index
    %c0_9 = arith.constant 0 : index
    %c0_10 = arith.constant 0 : index
    %c0_11 = arith.constant 0 : index
    %19 = vector.load %arg4[%c0_8, %c0_9, %c0_10, %c0_11] : memref<1x7x8x128xf32, #tpu.memory_space<vmem>>, vector<1x1x8x128xf32>
    %20 = vector.shape_cast %19 : vector<1x1x8x128xf32> to vector<8x128xf32>
    %21 = vector.shape_cast %18 : vector<8x128xf32> to vector<1x1x8x128xf32>
    tpu.vector_store %arg4[%c0_8, %c0_9, %c0_10, %c0_11], %21 {strides = array<i32>} : memref<1x7x8x128xf32, #tpu.memory_space<vmem>>, vector<1x1x8x128xf32>,
    %c0_12 = arith.constant 0 : index
    %c1 = arith.constant 1 : index
    %c0_13 = arith.constant 0 : index
    %c0_14 = arith.constant 0 : index
    %22 = vector.load %arg4[%c0_12, %c1, %c0_13, %c0_14] : memref<1x7x8x128xf32, #tpu.memory_space<vmem>>, vector<1x1x8x128xf32>
    %23 = vector.shape_cast %22 : vector<1x1x8x128xf32> to vector<8x128xf32>
    %24 = vector.shape_cast %6 : vector<16x128xf32> to vector<2x8x128xf32>
    %cst_15 = arith.constant dense<0.000000e+00> : vector<8x128xf32>
    %25 = vector.multi_reduction <add>, %24, %cst_15 [0] : vector<2x8x128xf32> to vector<8x128xf32>
    %26 = arith.addf %23, %25 : vector<8x128xf32>
    %c0_16 = arith.constant 0 : index
    %c1_17 = arith.constant 1 : index
    %c0_18 = arith.constant 0 : index
    %c0_19 = arith.constant 0 : index
    %27 = vector.load %arg4[%c0_16, %c1_17, %c0_18, %c0_19] : memref<1x7x8x128xf32, #tpu.memory_space<vmem>>, vector<1x1x8x128xf32>
    %28 = vector.shape_cast %27 : vector<1x1x8x128xf32> to vector<8x128xf32>
    %29 = vector.shape_cast %26 : vector<8x128xf32> to vector<1x1x8x128xf32>
    tpu.vector_store %arg4[%c0_16, %c1_17, %c0_18, %c0_19], %29 {strides = array<i32>} : memref<1x7x8x128xf32, #tpu.memory_space<vmem>>, vector<1x1x8x128xf32>,
    %c0_20 = arith.constant 0 : index
    %c2 = arith.constant 2 : index
    %c0_21 = arith.constant 0 : index
    %c0_22 = arith.constant 0 : index
    %30 = vector.load %arg4[%c0_20, %c2, %c0_21, %c0_22] : memref<1x7x8x128xf32, #tpu.memory_space<vmem>>, vector<1x1x8x128xf32>
    %31 = vector.shape_cast %30 : vector<1x1x8x128xf32> to vector<8x128xf32>
    %32 = vector.shape_cast %4 : vector<16x128xf32> to vector<2x8x128xf32>
    %cst_23 = arith.constant dense<0.000000e+00> : vector<8x128xf32>
    %33 = vector.multi_reduction <add>, %32, %cst_23 [0] : vector<2x8x128xf32> to vector<8x128xf32>
    %34 = arith.addf %31, %33 : vector<8x128xf32>
    %c0_24 = arith.constant 0 : index
    %c2_25 = arith.constant 2 : index
    %c0_26 = arith.constant 0 : index
    %c0_27 = arith.constant 0 : index
    %35 = vector.load %arg4[%c0_24, %c2_25, %c0_26, %c0_27] : memref<1x7x8x128xf32, #tpu.memory_space<vmem>>, vector<1x1x8x128xf32>
    %36 = vector.shape_cast %35 : vector<1x1x8x128xf32> to vector<8x128xf32>
    %37 = vector.shape_cast %34 : vector<8x128xf32> to vector<1x1x8x128xf32>
    tpu.vector_store %arg4[%c0_24, %c2_25, %c0_26, %c0_27], %37 {strides = array<i32>} : memref<1x7x8x128xf32, #tpu.memory_space<vmem>>, vector<1x1x8x128xf32>,
    %c0_28 = arith.constant 0 : index
    %c3 = arith.constant 3 : index
    %c0_29 = arith.constant 0 : index
    %c0_30 = arith.constant 0 : index
    %38 = vector.load %arg4[%c0_28, %c3, %c0_29, %c0_30] : memref<1x7x8x128xf32, #tpu.memory_space<vmem>>, vector<1x1x8x128xf32>
    %39 = vector.shape_cast %38 : vector<1x1x8x128xf32> to vector<8x128xf32>
    %40 = vector.shape_cast %7 : vector<16x128xf32> to vector<2x8x128xf32>
    %cst_31 = arith.constant dense<0.000000e+00> : vector<8x128xf32>
    %41 = vector.multi_reduction <add>, %40, %cst_31 [0] : vector<2x8x128xf32> to vector<8x128xf32>
    %42 = arith.addf %39, %41 : vector<8x128xf32>
    %c0_32 = arith.constant 0 : index
    %c3_33 = arith.constant 3 : index
    %c0_34 = arith.constant 0 : index
    %c0_35 = arith.constant 0 : index
    %43 = vector.load %arg4[%c0_32, %c3_33, %c0_34, %c0_35] : memref<1x7x8x128xf32, #tpu.memory_space<vmem>>, vector<1x1x8x128xf32>
    %44 = vector.shape_cast %43 : vector<1x1x8x128xf32> to vector<8x128xf32>
    %45 = vector.shape_cast %42 : vector<8x128xf32> to vector<1x1x8x128xf32>
    tpu.vector_store %arg4[%c0_32, %c3_33, %c0_34, %c0_35], %45 {strides = array<i32>} : memref<1x7x8x128xf32, #tpu.memory_space<vmem>>, vector<1x1x8x128xf32>,
    %c0_36 = arith.constant 0 : index
    %c4 = arith.constant 4 : index
    %c0_37 = arith.constant 0 : index
    %c0_38 = arith.constant 0 : index
    %46 = vector.load %arg4[%c0_36, %c4, %c0_37, %c0_38] : memref<1x7x8x128xf32, #tpu.memory_space<vmem>>, vector<1x1x8x128xf32>
    %47 = vector.shape_cast %46 : vector<1x1x8x128xf32> to vector<8x128xf32>
    %48 = vector.shape_cast %11 : vector<16x128xf32> to vector<2x8x128xf32>
    %cst_39 = arith.constant dense<0.000000e+00> : vector<8x128xf32>
    %49 = vector.multi_reduction <add>, %48, %cst_39 [0] : vector<2x8x128xf32> to vector<8x128xf32>
    %50 = arith.addf %47, %49 : vector<8x128xf32>
    %c0_40 = arith.constant 0 : index
    %c4_41 = arith.constant 4 : index
    %c0_42 = arith.constant 0 : index
    %c0_43 = arith.constant 0 : index
    %51 = vector.load %arg4[%c0_40, %c4_41, %c0_42, %c0_43] : memref<1x7x8x128xf32, #tpu.memory_space<vmem>>, vector<1x1x8x128xf32>
    %52 = vector.shape_cast %51 : vector<1x1x8x128xf32> to vector<8x128xf32>
    %53 = vector.shape_cast %50 : vector<8x128xf32> to vector<1x1x8x128xf32>
    tpu.vector_store %arg4[%c0_40, %c4_41, %c0_42, %c0_43], %53 {strides = array<i32>} : memref<1x7x8x128xf32, #tpu.memory_space<vmem>>, vector<1x1x8x128xf32>,
    %c0_44 = arith.constant 0 : index
    %c5 = arith.constant 5 : index
    %c0_45 = arith.constant 0 : index
    %c0_46 = arith.constant 0 : index
    %54 = vector.load %arg4[%c0_44, %c5, %c0_45, %c0_46] : memref<1x7x8x128xf32, #tpu.memory_space<vmem>>, vector<1x1x8x128xf32>
    %55 = vector.shape_cast %54 : vector<1x1x8x128xf32> to vector<8x128xf32>
    %56 = vector.shape_cast %12 : vector<16x128xf32> to vector<2x8x128xf32>
    %cst_47 = arith.constant dense<0.000000e+00> : vector<8x128xf32>
    %57 = vector.multi_reduction <add>, %56, %cst_47 [0] : vector<2x8x128xf32> to vector<8x128xf32>
    %58 = arith.addf %55, %57 : vector<8x128xf32>
    %c0_48 = arith.constant 0 : index
    %c5_49 = arith.constant 5 : index
    %c0_50 = arith.constant 0 : index
    %c0_51 = arith.constant 0 : index
    %59 = vector.load %arg4[%c0_48, %c5_49, %c0_50, %c0_51] : memref<1x7x8x128xf32, #tpu.memory_space<vmem>>, vector<1x1x8x128xf32>
    %60 = vector.shape_cast %59 : vector<1x1x8x128xf32> to vector<8x128xf32>
    %61 = vector.shape_cast %58 : vector<8x128xf32> to vector<1x1x8x128xf32>
    tpu.vector_store %arg4[%c0_48, %c5_49, %c0_50, %c0_51], %61 {strides = array<i32>} : memref<1x7x8x128xf32, #tpu.memory_space<vmem>>, vector<1x1x8x128xf32>,
    %c0_52 = arith.constant 0 : index
    %c6 = arith.constant 6 : index
    %c0_53 = arith.constant 0 : index
    %c0_54 = arith.constant 0 : index
    %62 = vector.load %arg4[%c0_52, %c6, %c0_53, %c0_54] : memref<1x7x8x128xf32, #tpu.memory_space<vmem>>, vector<1x1x8x128xf32>
    %63 = vector.shape_cast %62 : vector<1x1x8x128xf32> to vector<8x128xf32>
    %64 = vector.shape_cast %13 : vector<16x128xf32> to vector<2x8x128xf32>
    %cst_55 = arith.constant dense<0.000000e+00> : vector<8x128xf32>
    %65 = vector.multi_reduction <add>, %64, %cst_55 [0] : vector<2x8x128xf32> to vector<8x128xf32>
    %66 = arith.addf %63, %65 : vector<8x128xf32>
    %c0_56 = arith.constant 0 : index
    %c6_57 = arith.constant 6 : index
    %c0_58 = arith.constant 0 : index
    %c0_59 = arith.constant 0 : index
    %67 = vector.load %arg4[%c0_56, %c6_57, %c0_58, %c0_59] : memref<1x7x8x128xf32, #tpu.memory_space<vmem>>, vector<1x1x8x128xf32>
    %68 = vector.shape_cast %67 : vector<1x1x8x128xf32> to vector<8x128xf32>
    %69 = vector.shape_cast %66 : vector<8x128xf32> to vector<1x1x8x128xf32>
    tpu.vector_store %arg4[%c0_56, %c6_57, %c0_58, %c0_59], %69 {strides = array<i32>} : memref<1x7x8x128xf32, #tpu.memory_space<vmem>>, vector<1x1x8x128xf32>,
    return
  }
  func.func @transform_0(%arg0: i32, %arg1: i32) -> (i32, i32) {
    %c1_i32 = arith.constant 1 : i32
    %0 = arith.muli %arg0, %c1_i32 : i32
    %1 = arith.addi %0, %arg1 : i32
    %c0_i32 = arith.constant 0 : i32
    %2 = arith.minsi %1, %c0_i32 : i32
    %c0_i32_0 = arith.constant 0 : i32
    %c0_i32_1 = arith.constant 0 : i32
    return %2, %c0_i32_0 : i32, i32
  }
  func.func @transform_1(%arg0: i32, %arg1: i32) -> (i32, i32) {
    %c1_i32 = arith.constant 1 : i32
    %0 = arith.muli %arg0, %c1_i32 : i32
    %1 = arith.addi %0, %arg1 : i32
    %c0_i32 = arith.constant 0 : i32
    %2 = arith.minsi %1, %c0_i32 : i32
    %c0_i32_0 = arith.constant 0 : i32
    %c0_i32_1 = arith.constant 0 : i32
    return %2, %c0_i32_0 : i32, i32
  }
  func.func @transform_2(%arg0: i32, %arg1: i32) -> (i32, i32, i32, i32) {
    %c0_i32 = arith.constant 0 : i32
    %c0_i32_0 = arith.constant 0 : i32
    %c0_i32_1 = arith.constant 0 : i32
    %c0_i32_2 = arith.constant 0 : i32
    return %arg0, %c0_i32, %c0_i32_0, %c0_i32_1 : i32, i32, i32, i32
  }
}

</mosaic_0001>

<llo_original>
// kernel: tpu_custom_call.1
$region0: #{tpu_custom_call.1}
  #allocation0 [shape = 'u32[]', space=smem, size = 0x4, offset = 0x4, fixed_abs, tag = 'smem constant byte address 0x4 - core index']
  #allocation1 [shape = 'u32[144,128]{1,0:T(1,128)}', space=vmem, size = 0x12000, scoped, tag = 'internal scratch']
  %s0 = inlined_call_operand.hbm [shape: f32[16,128], index: 0, kind: input, shape index: {}]
  %s1 = inlined_call_operand.hbm [shape: f32[16,128], index: 1, kind: input, shape index: {}]
  %s2 = inlined_call_operand.hbm [shape: f32[1,7,8,128], index: 2, kind: output, shape index: {}]
  %s3 = sld [smem:[#allocation0]]
  $region30: #{tpu_custom_call.1} parent=0
    _
  %s5 = ssub.s32 1, %s3
  %s6 = scalar_select 0, %s5, %s3
  $region1: #{tpu_custom_call.1} parent=0
    #allocation2 [shape = 'u8[8192]{0}', space=vmem, size = 0x2000, scoped, tag = 'input window, operand 0, single buffered']
    #allocation3 [shape = 's32[1]{0}', space=sflag, size = 0x4, scoped, tag = 'scoped memory for tpu_custom_call.1']
    #allocation4 [shape = 's32[1]{0}', space=sflag, size = 0x4, scoped, tag = 'scoped memory for tpu_custom_call.1']
    #allocation5 [shape = 'u8[8192]{0}', space=vmem, size = 0x2000, scoped, tag = 'input window, operand 1, single buffered']
    #allocation6 [shape = 's32[1]{0}', space=sflag, size = 0x4, scoped, tag = 'scoped memory for tpu_custom_call.1']
    #allocation7 [shape = 'u8[28672]{0}', space=vmem, size = 0x7000, scoped, tag = 'output window, operand 0, single buffered']
    %7 = vsyncpa [#allocation3], 0
    %8 = vsyncpa [#allocation6], 0
    %9 = vsyncpa [#allocation4], 0
    // Predicated region
    $region2: #{tpu_custom_call.1} parent=1 // pred_check
      _
    $region3: #{tpu_custom_call.1} parent=1 // pred_check_branch
      %11 = sbr.rel (0) target = $region5
    $region4: #{tpu_custom_call.1} parent=1 // pred_region
      %s12 = sadd.s32 0, 0
      %p13 = scmp.lt.s32.totalorder %s12, 0
      %s14 = scalar_select %p13, %s12, 0
      %s15 = smul.u32 2, %s14
      %s17 = ssub.s32 256, 256
      %18 = vsyncadd [#allocation3], %s17
      %s19 = smul.addr %s15, 128
      %s20 = scalar_lea.hbm %s0, %s19
      %s21 = sshll.u32 [#allocation2], 4
      %s22 = int_to_ptr.vmem [resolvable:$true] %s21
      %27 = dma.hbm_to_vmem [thread:$0]  %s20, 256, %s22, [#allocation3], 128, 128, 8
    $region5: #{tpu_custom_call.1} parent=1 // pred_fallthru
      _
    // Predicated region
    $region6: #{tpu_custom_call.1} parent=1 // pred_check
      _
    $region7: #{tpu_custom_call.1} parent=1 // pred_check_branch
      %29 = sbr.rel (0) target = $region9
    $region8: #{tpu_custom_call.1} parent=1 // pred_region
      %s30 = sadd.s32 0, 0
      %p31 = scmp.lt.s32.totalorder %s30, 0
      %s32 = scalar_select %p31, %s30, 0
      %s33 = smul.u32 2, %s32
      %s35 = ssub.s32 256, 256
      %36 = vsyncadd [#allocation6], %s35
      %s37 = smul.addr %s33, 128
      %s38 = scalar_lea.hbm %s1, %s37
      %s39 = sshll.u32 [#allocation5], 4
      %s40 = int_to_ptr.vmem [resolvable:$true] %s39
      %45 = dma.hbm_to_vmem [thread:$0]  %s38, 256, %s40, [#allocation6], 128, 128, 8
    $region9: #{tpu_custom_call.1} parent=1 // pred_fallthru
      _
    // Predicated region
    $region10: #{tpu_custom_call.1} parent=1 // pred_check
      _
    $region11: #{tpu_custom_call.1} parent=1 // pred_check_branch
      %47 = sbr.rel (0) target = $region13
    $region12: #{tpu_custom_call.1} parent=1 // pred_region
      %48 = dma.done [#allocation3], 256
    $region13: #{tpu_custom_call.1} parent=1 // pred_fallthru
      _
    // Predicated region
    $region14: #{tpu_custom_call.1} parent=1 // pred_check
      _
    $region15: #{tpu_custom_call.1} parent=1 // pred_check_branch
      %50 = sbr.rel (0) target = $region17
    $region16: #{tpu_custom_call.1} parent=1 // pred_region
      %51 = dma.done [#allocation6], 256
    $region17: #{tpu_custom_call.1} parent=1 // pred_fallthru
      _
    %s52 = sadd.s32 0, 0
    %p53 = scmp.lt.s32.totalorder %s52, 0
    %s54 = scalar_select %p53, %s52, 0
    %s55 = smul.u32 2, %s54
    %s56 = sadd.s32 0, 0
    %p57 = scmp.lt.s32.totalorder %s56, 0
    %s58 = scalar_select %p57, %s56, 0
    %s59 = smul.u32 2, %s58
    %p60 = scmp.eq.s32.totalorder 0, 0
    // Predicated region
    $region18: #{tpu_custom_call.1} parent=1 // pred_check
      %p61 = pneg %p60
    $region19: #{tpu_custom_call.1} parent=1 // pred_check_branch
      %63 = sbr.rel (%p61) target = $region21
    $region20: #{tpu_custom_call.1} parent=1 // pred_region
      %64 = vst [vmem:[#allocation7] sm:$0xff] 0.0
      %65 = vst [vmem:[#allocation7 + $0x8] sm:$0xff] 0.0
      %66 = vst [vmem:[#allocation7 + $0x10] sm:$0xff] 0.0
      %67 = vst [vmem:[#allocation7 + $0x18] sm:$0xff] 0.0
      %68 = vst [vmem:[#allocation7 + $0x20] sm:$0xff] 0.0
      %69 = vst [vmem:[#allocation7 + $0x28] sm:$0xff] 0.0
      %70 = vst [vmem:[#allocation7 + $0x30] sm:$0xff] 0.0
    $region21: #{tpu_custom_call.1} parent=1 // pred_fallthru
      _
    %v71 = vld [vmem:[#allocation2] sm:$0xff]
    %v72 = vld [vmem:[#allocation2 + $0x8] sm:$0xff]
    %v73 = vld [vmem:[#allocation5] sm:$0xff]
    %v74 = vld [vmem:[#allocation5 + $0x8] sm:$0xff]
    %v75 = vsub.f32 %v71, %v73
    %v76 = vsub.f32 %v72, %v74
    %v77 = vmul.f32 %v71, %v71
    %v78 = vmul.f32 %v72, %v72
    %v79 = vmul.f32 %v73, %v73
    %v80 = vmul.f32 %v74, %v74
    %v81 = vmul.f32 %v77, %v71
    %v82 = vmul.f32 %v78, %v72
    %v83 = vmul.f32 %v79, %v73
    %v84 = vmul.f32 %v80, %v74
    %v85 = vsub.f32 %v81, %v83
    %v86 = vsub.f32 %v82, %v84
    %v87 = vmul.f32 %v75, %v75
    %v88 = vmul.f32 %v76, %v76
    %v89 = vand.u32 2147483647, %v75
    %v90 = vand.u32 2147483647, %v76
    %v91 = vmul.f32 %v85, %v85
    %v92 = vmul.f32 %v86, %v86
    %v93 = vld [vmem:[#allocation7] sm:$0xff]
    %v94 = vadd.f32 %v71, %v72
    %v95 = vadd.f32 %v93, %v94
    %96 = vst [vmem:[#allocation7] sm:$0xff] %v95
    %s97 = scalar_lea.vmem [#allocation7], 8
    %v98 = vld [vmem:[%s97] sm:$0xff]
    %v99 = vadd.f32 %v77, %v78
    %v100 = vadd.f32 %v98, %v99
    %101 = vst [vmem:[%s97] sm:$0xff] %v100
    %s102 = scalar_lea.vmem [#allocation7], 16
    %v103 = vld [vmem:[%s102] sm:$0xff]
    %v104 = vadd.f32 %v73, %v74
    %v105 = vadd.f32 %v103, %v104
    %106 = vst [vmem:[%s102] sm:$0xff] %v105
    %s107 = scalar_lea.vmem [#allocation7], 24
    %v108 = vld [vmem:[%s107] sm:$0xff]
    %v109 = vadd.f32 %v79, %v80
    %v110 = vadd.f32 %v108, %v109
    %111 = vst [vmem:[%s107] sm:$0xff] %v110
    %s112 = scalar_lea.vmem [#allocation7], 32
    %v113 = vld [vmem:[%s112] sm:$0xff]
    %v114 = vadd.f32 %v87, %v88
    %v115 = vadd.f32 %v113, %v114
    %116 = vst [vmem:[%s112] sm:$0xff] %v115
    %s117 = scalar_lea.vmem [#allocation7], 40
    %v118 = vld [vmem:[%s117] sm:$0xff]
    %v119 = vadd.f32 %v89, %v90
    %v120 = vadd.f32 %v118, %v119
    %121 = vst [vmem:[%s117] sm:$0xff] %v120
    %s122 = scalar_lea.vmem [#allocation7], 48
    %v123 = vld [vmem:[%s122] sm:$0xff]
    %v124 = vadd.f32 %v91, %v92
    %v125 = vadd.f32 %v123, %v124
    %126 = vst [vmem:[%s122] sm:$0xff] %v125
    // Predicated region
    $region22: #{tpu_custom_call.1} parent=1 // pred_check
      _
    $region23: #{tpu_custom_call.1} parent=1 // pred_check_branch
      %128 = sbr.rel (0) target = $region25
    $region24: #{tpu_custom_call.1} parent=1 // pred_region
      %s130 = ssub.s32 896, 896
      %131 = vsyncadd [#allocation4], %s130
      %s132 = sshll.u32 [#allocation7], 4
      %s133 = int_to_ptr.vmem [resolvable:$true] %s132
      %138 = dma.vmem_to_hbm [thread:$0]  %s133, 896, %s2, [#allocation4], 128, 128, 8
    $region25: #{tpu_custom_call.1} parent=1 // pred_fallthru
      _
    // Predicated region
    $region26: #{tpu_custom_call.1} parent=1 // pred_check
      _
    $region27: #{tpu_custom_call.1} parent=1 // pred_check_branch
      %140 = sbr.rel (0) target = $region29
    $region28: #{tpu_custom_call.1} parent=1 // pred_region
      %141 = dma.done [#allocation4], 896
    $region29: #{tpu_custom_call.1} parent=1 // pred_fallthru
      _
    %142 = vsyncpa [#allocation3], 1
    %143 = vsyncpa [#allocation6], 1
    %144 = vsyncpa [#allocation4], 1

</llo_original>
